<compile_context>
chip_gen: v7x
topology: tpu7x:2x2x1
jax: 0.10.0
libtpu: 0.0.40
codegen_flags: <defaults>
</compile_context>

<pallas_src>
import functools
import math

import jax
import jax.numpy as jnp
from jax.experimental import pallas as pl
from jax.experimental.pallas import tpu as pltpu


_LANE = 128
_VMEM_SOFT_BUDGET = 40 * 1024 * 1024      # conservative across v5e/v6e/v7x


def _choose_tile(n, cap, multiple, min_tile=128):
    """Return (tile, padded_n) with tile <= cap and padded_n % tile == 0.

    n <= cap           -> one full-extent block (always layout-legal).
    n > cap            -> largest exact divisor that is a multiple of `multiple`
                          and >= min_tile; otherwise pad to the multiple-aligned
                          tile that minimizes the padded length (never falls
                          back to a full-extent block that could blow VMEM).
    """
    if n <= cap:
        return int(n), int(n)
    min_tile = min(min_tile, cap)
    t = (cap // multiple) * multiple
    while t >= min_tile:
        if n % t == 0:
            return int(t), int(n)
        t -= multiple
    best = None
    t = multiple
    while t <= cap:
        if t >= min_tile:
            pad_n = ((n + t - 1) // t) * t
            if best is None or pad_n < best[1] or (pad_n == best[1] and t > best[0]):
                best = (int(t), int(pad_n))
        t += multiple
    return best


def _vmem_limit(estimate_bytes):
    # Raise the scoped-VMEM limit above v5e's 16 MiB default, leave headroom,
    # stay below v7x's 64 MiB physical VMEM.
    return int(min(56 * 1024 * 1024, max(32 * 1024 * 1024, 2 * estimate_bytes)))


# ---------------------------------------------------------------------------
# Linear projection kernel:  y = x @ W + b   (rows flattened over (B, S))
# ---------------------------------------------------------------------------
def _linear_kernel(compute_dtype, x_ref, w_ref, b_ref, o_ref):
    x = x_ref[...].astype(compute_dtype)          # (ts, Din)
    y = jnp.dot(x, w_ref[...], preferred_element_type=jnp.float32) + b_ref[...]
    o_ref[...] = y.astype(o_ref.dtype)


def _linear(x, w, b, *, compute_dtype, out_dtype, row_cap=512):
    """x: (..., Din) -> (..., Dout).  Rows are flattened and tiled at <=512."""
    *lead, Din = x.shape
    Dout = w.shape[1]
    M = 1
    for d in lead:
        M *= d
    x2 = x.reshape(M, Din)

    mult = 16 if jnp.dtype(compute_dtype) == jnp.dtype(jnp.bfloat16) else 8
    ts, Mp = _choose_tile(M, row_cap, mult)
    if Mp != M:
        x2 = jnp.pad(x2, ((0, Mp - M), (0, 0)))

    w_c = w.astype(compute_dtype)
    b_c = b.reshape(1, Dout).astype(jnp.float32)

    xi = x2.dtype.itemsize
    ci = jnp.dtype(compute_dtype).itemsize
    oi = jnp.dtype(out_dtype).itemsize
    # TODO(synk): a (Din, Dout) weight whose double-buffered footprint exceeds
    #             the VMEM budget would need an extra Dout grid axis.
    est = 2 * (ts * Din * xi + Din * Dout * ci + Dout * 4 + ts * Dout * oi)
    cost = pl.CostEstimate(
        flops=int(2 * Mp * Din * Dout),
        transcendentals=0,
        bytes_accessed=int(Mp * Din * xi + Din * Dout * ci + Dout * 4
                           + Mp * Dout * oi))

    y = pl.pallas_call(
        functools.partial(_linear_kernel, compute_dtype),
        out_shape=jax.ShapeDtypeStruct((Mp, Dout), out_dtype),
        grid=(Mp // ts,),
        in_specs=[
            pl.BlockSpec((ts, Din), lambda i: (i, 0)),
            pl.BlockSpec((Din, Dout), lambda i: (0, 0)),
            pl.BlockSpec((1, Dout), lambda i: (0, 0)),
        ],
        out_specs=pl.BlockSpec((ts, Dout), lambda i: (i, 0)),
        compiler_params=pltpu.CompilerParams(
            dimension_semantics=("parallel",),
            vmem_limit_bytes=_vmem_limit(est)),
        cost_estimate=cost,
    )(x2, w_c, b_c)

    if Mp != M:
        y = y[:M]
    return y.reshape(*lead, Dout)


# ---------------------------------------------------------------------------
# Flash-style attention kernel (online softmax over kv tiles, lane-dense
# scratch updates, hoisted additive mask bias, fused output projection).
# ---------------------------------------------------------------------------
def _attention_kernel(h, d_k, mask_mode, fuse_out, compute_dtype, approx_recip,
                      *refs):
    it = iter(refs)
    q_ref = next(it)
    k_ref = next(it)
    v_ref = next(it)
    mask_ref = next(it) if mask_mode != "none" else None
    wo_ref = next(it) if fuse_out else None
    bo_ref = next(it) if fuse_out else None
    o_ref = next(it)
    acc_ref = next(it)
    m_ref = next(it)
    l_ref = next(it)

    kv_i = pl.program_id(2)
    n_kv = pl.num_programs(2)

    @pl.when(kv_i == 0)
    def _init():
        acc_ref[...] = jnp.zeros_like(acc_ref)
        l_ref[...] = jnp.zeros_like(l_ref)
        m_ref[...] = jnp.full(m_ref.shape, -jnp.inf, dtype=m_ref.dtype)

    q = q_ref[0].astype(compute_dtype)      # (tq, D); 1/sqrt(d_k) folded into Wq
    k = k_ref[0].astype(compute_dtype)      # (tk, D)
    v = v_ref[0].astype(compute_dtype)      # (tk, D)
    tq = q.shape[0]
    tk = k.shape[0]

    # Additive mask bias, built ONCE per kv step (no per-head re-broadcast).
    if mask_mode == "none":
        bias = None
    else:
        mrow = mask_ref[0]                   # (1, tk) or (tq, tk) int8
        bias = jnp.where(mrow != 0, jnp.float32(0.0), jnp.float32(-1e9))
        bias = jnp.broadcast_to(bias.astype(jnp.float32), (tq, tk))

    # One lane-dense read of the running state.
    acc_prev = acc_ref[...]                  # (tq, D)  f32
    m_prev_all = m_ref[...]                  # (tq, h)  f32
    l_prev_all = l_ref[...]                  # (tq, h)  f32

    nt = (((1,), (1,)), ((), ()))            # (tq,d) x (tk,d)  -> (tq,tk)
    nn = (((1,), (0,)), ((), ()))            # (tq,tk) x (tk,d) -> (tq,d)

    m_parts, l_parts, acc_parts = [], [], []
    for i in range(h):                       # static head loop, register slices
        lo, hi = i * d_k, (i + 1) * d_k
        s = jax.lax.dot_general(q[:, lo:hi], k[:, lo:hi], nt,
                                preferred_element_type=jnp.float32)
        if bias is not None:
            s = s + bias                     # == torch masked_fill(-1e9)

        m_prev = m_prev_all[:, i:i + 1]
        m_new = jnp.maximum(m_prev, jnp.max(s, axis=-1, keepdims=True))
        alpha = jnp.exp(m_prev - m_new)
        p = jnp.exp(s - m_new)               # (tq, tk) f32
        l_parts.append(alpha * l_prev_all[:, i:i + 1]
                       + jnp.sum(p, axis=-1, keepdims=True))
        pv = jax.lax.dot_general(p.astype(compute_dtype), v[:, lo:hi], nn,
                                 preferred_element_type=jnp.float32)
        acc_parts.append(alpha * acc_prev[:, lo:hi] + pv)
        m_parts.append(m_new)

    # One lane-dense store per kv step (no masked partial stores per head).
    acc_ref[...] = jnp.concatenate(acc_parts, axis=-1)
    m_ref[...] = jnp.concatenate(m_parts, axis=-1)
    l_ref[...] = jnp.concatenate(l_parts, axis=-1)

    @pl.when(kv_i == n_kv - 1)
    def _finalize():
        inv_l = pl.reciprocal(l_ref[...], approx=approx_recip)   # (tq, h)
        inv_full = jnp.concatenate(
            [jnp.broadcast_to(inv_l[:, i:i + 1], (tq, d_k)) for i in range(h)],
            axis=-1)                                             # (tq, D)
        ctx = acc_ref[...] * inv_full                            # single pass
        if fuse_out:
            out = jnp.dot(ctx.astype(compute_dtype), wo_ref[...],
                          preferred_element_type=jnp.float32) + bo_ref[...]
            o_ref[0] = out.astype(o_ref.dtype)
        else:
            o_ref[0] = ctx.astype(o_ref.dtype)


def _flash_attention(q_p, k_p, v_p, wo, bo, mask_can, mask_mode, h, *,
                     compute_dtype, out_dtype, fuse_out):
    B, Sq, D = q_p.shape
    Sk = k_p.shape[1]
    d_k = D // h
    E = wo.shape[1] if fuse_out else D

    cd = jnp.dtype(compute_dtype)
    is_bf16 = cd == jnp.dtype(jnp.bfloat16)
    q_mult = 16 if is_bf16 else 8
    ci = cd.itemsize
    oi = jnp.dtype(out_dtype).itemsize

    def vmem_est(tq_, tk_):
        bts = 2 * tq_ * D * q_p.dtype.itemsize            # q block (dbl-buffered)
        bts += 2 * 2 * tk_ * D * k_p.dtype.itemsize       # k + v blocks
        if mask_mode == "key":
            bts += 2 * tk_
        elif mask_mode == "full":
            bts += 2 * tq_ * tk_
        if fuse_out:
            bts += 2 * (D * E * ci + E * 4)
        bts += 2 * tq_ * E * oi                           # output block
        bts += tq_ * D * 4 + 2 * tq_ * h * 4              # f32 scratch
        return bts

    cap_q = cap_k = 512
    while True:
        tq, Sq_pad = _choose_tile(Sq, cap_q, q_mult)
        tk, Sk_pad = _choose_tile(Sk, cap_k, _LANE)
        est = vmem_est(tq, tk)
        if est <= _VMEM_SOFT_BUDGET or (cap_q <= 128 and cap_k <= 128):
            break
        if cap_k >= cap_q and cap_k > 128:
            cap_k //= 2
        else:
            cap_q //= 2

    # Pad awkward sequence lengths instead of using giant full-extent blocks.
    if Sq_pad != Sq:
        q_p = jnp.pad(q_p, ((0, 0), (0, Sq_pad - Sq), (0, 0)))
    if Sk_pad != Sk:
        pad_k = Sk_pad - Sk
        k_p = jnp.pad(k_p, ((0, 0), (0, pad_k), (0, 0)))
        v_p = jnp.pad(v_p, ((0, 0), (0, pad_k), (0, 0)))
        if mask_mode == "none":          # padded keys must be excluded
            mask_can = jnp.concatenate(
                [jnp.ones((B, 1, Sk), jnp.int8),
                 jnp.zeros((B, 1, pad_k), jnp.int8)], axis=-1)
            mask_mode = "key"
        else:
            mask_can = jnp.pad(mask_can, ((0, 0), (0, 0), (0, pad_k)))
    if mask_mode == "full" and Sq_pad != Sq:
        mask_can = jnp.pad(mask_can, ((0, 0), (0, Sq_pad - Sq), (0, 0)),
                           constant_values=1)

    grid = (B, Sq_pad // tq, Sk_pad // tk)

    in_specs = [
        pl.BlockSpec((1, tq, D), lambda b, qi, ki: (b, qi, 0)),
        pl.BlockSpec((1, tk, D), lambda b, qi, ki: (b, ki, 0)),
        pl.BlockSpec((1, tk, D), lambda b, qi, ki: (b, ki, 0)),
    ]
    inputs = [q_p, k_p, v_p]
    if mask_mode == "key":        # (B, 1, Sk) int8 padding mask
        in_specs.append(pl.BlockSpec((1, 1, tk), lambda b, qi, ki: (b, 0, ki)))
        inputs.append(mask_can)
    elif mask_mode == "full":     # (B, Sq, Sk) int8 mask
        in_specs.append(pl.BlockSpec((1, tq, tk), lambda b, qi, ki: (b, qi, ki)))
        inputs.append(mask_can)
    if fuse_out:
        in_specs += [pl.BlockSpec((D, E), lambda b, qi, ki: (0, 0)),
                     pl.BlockSpec((1, E), lambda b, qi, ki: (0, 0))]
        inputs += [wo.astype(compute_dtype),       # compute-dtype weight (v7x VMEM)
                   bo.reshape(1, E).astype(jnp.float32)]

    flops = 4 * B * Sq_pad * Sk_pad * D
    if fuse_out:
        flops += 2 * B * Sq_pad * D * E
    bytes_acc = sum(int(a.size) * a.dtype.itemsize for a in inputs)
    bytes_acc += B * Sq_pad * E * oi
    cost = pl.CostEstimate(flops=int(flops),
                           transcendentals=int(B * h * Sq_pad * Sk_pad),
                           bytes_accessed=int(bytes_acc))

    kernel = functools.partial(_attention_kernel, h, d_k, mask_mode, fuse_out,
                               compute_dtype, is_bf16)

    out = pl.pallas_call(
        kernel,
        out_shape=jax.ShapeDtypeStruct((B, Sq_pad, E), out_dtype),
        grid=grid,
        in_specs=in_specs,
        out_specs=pl.BlockSpec((1, tq, E), lambda b, qi, ki: (b, qi, 0)),
        scratch_shapes=[
            pltpu.VMEM((tq, D), jnp.float32),   # ctx accumulator
            pltpu.VMEM((tq, h), jnp.float32),   # running max per head
            pltpu.VMEM((tq, h), jnp.float32),   # running sum per head
        ],
        compiler_params=pltpu.CompilerParams(
            dimension_semantics=("parallel", "parallel", "arbitrary"),
            vmem_limit_bytes=_vmem_limit(est)),
        cost_estimate=cost,
    )(*inputs)

    if Sq_pad != Sq:
        out = out[:, :Sq]
    return out


# ---------------------------------------------------------------------------
# Wrapper
# ---------------------------------------------------------------------------
def _canonicalize_mask(mask, B, Sq, Sk):
    """Reduce a torch-broadcastable mask to its minimal int8 form."""
    if mask is None:
        return None, "none"
    m = jnp.asarray(mask)
    if m.ndim > 4:
        raise ValueError(f"mask rank {m.ndim} > 4")
    while m.ndim < 4:
        m = m[None]
    if m.shape[1] != 1:
        raise NotImplementedError("per-head masks are not supported")
    m = (m[:, 0] != 0).astype(jnp.int8)          # (b?, q?, k?)
    if m.shape[1] == 1:
        return jnp.broadcast_to(m, (B, 1, Sk)), "key"
    return jnp.broadcast_to(m, (B, Sq, Sk)), "full"


def multi_head_attention(params, query, key, value, mask=None,
                         compute_dtype=jnp.float32, fuse_out_proj=None):
    """Pallas forward pass of MultiHeadAttentionLayer (dr_rate=0).

    query: (B, Sq, d_embed); key/value: (B, Sk, d_embed)
    mask: None, or torch-broadcastable to (B, h, Sq, Sk) with a size-1 head dim
    compute_dtype: jnp.float32 (exact) or jnp.bfloat16 (recommended MXU fast
                   path on v5e/v6e/v7x; f32 accumulation + f32 softmax math)
    fuse_out_proj: None = auto (fuse unless the (D,E) weight is too big for
                   VMEM, e.g. v7x), or an explicit bool.
    returns: (B, Sq, d_embed) float32
    """
    B, Sq, _ = query.shape
    Sk = key.shape[1]
    wq, bq = params["wq"], params["bq"]
    wk, bk = params["wk"], params["bk"]
    wv, bv = params["wv"], params["bv"]
    wo, bo = params["wo"], params["bo"]
    D = wq.shape[1]
    h = params["h"]
    assert D % h == 0
    d_k = D // h
    scale = 1.0 / math.sqrt(d_k)

    cd = jnp.dtype(compute_dtype)
    wq_s, bq_s = wq * scale, bq * scale   # fold 1/sqrt(d_k) into the Q projection

    lin = functools.partial(_linear, compute_dtype=compute_dtype,
                            out_dtype=compute_dtype)

    # Fused projections: one activation read + one launch for self-attention.
    if (query is key) and (key is value):
        w_qkv = jnp.concatenate([wq_s, wk, wv], axis=1)
        b_qkv = jnp.concatenate([bq_s, bk, bv], axis=0)
        qkv = lin(query, w_qkv, b_qkv)
        q_p, k_p, v_p = qkv[..., :D], qkv[..., D:2 * D], qkv[..., 2 * D:]
    elif key is value:
        q_p = lin(query, wq_s, bq_s)
        kv = lin(key, jnp.concatenate([wk, wv], axis=1),
                 jnp.concatenate([bk, bv], axis=0))
        k_p, v_p = kv[..., :D], kv[..., D:]
    else:
        q_p = lin(query, wq_s, bq_s)
        k_p = lin(key, wk, bk)
        v_p = lin(value, wv, bv)

    E = wo.shape[1]
    if fuse_out_proj is None:
        # Keep the (D, E) output-projection weight resident only when its
        # double-buffered footprint is modest (v7x has just 64 MiB VMEM).
        fuse_out = 2 * D * E * cd.itemsize <= 8 * 1024 * 1024
    else:
        fuse_out = bool(fuse_out_proj)

    mask_can, mask_mode = _canonicalize_mask(mask, B, Sq, Sk)

    if fuse_out:
        return _flash_attention(q_p, k_p, v_p, wo, bo, mask_can, mask_mode, h,
                                compute_dtype=compute_dtype,
                                out_dtype=jnp.float32, fuse_out=True)
    ctx = _flash_attention(q_p, k_p, v_p, wo, bo, mask_can, mask_mode, h,
                           compute_dtype=compute_dtype,
                           out_dtype=compute_dtype, fuse_out=False)
    return _linear(ctx, wo, bo, compute_dtype=compute_dtype,
                   out_dtype=jnp.float32)


def init_params(key, d_embed, d_model, h):
    """nn.Linear-style init (uniform +-1/sqrt(fan_in)); weights are (in, out)."""
    ks = jax.random.split(key, 8)

    def lin(kw, kb, fan_in, fan_out):
        bound = 1.0 / math.sqrt(fan_in)
        w = jax.random.uniform(kw, (fan_in, fan_out), jnp.float32, -bound, bound)
        b = jax.random.uniform(kb, (fan_out,), jnp.float32, -bound, bound)
        return w, b

    wq, bq = lin(ks[0], ks[1], d_embed, d_model)
    wk, bk = lin(ks[2], ks[3], d_embed, d_model)
    wv, bv = lin(ks[4], ks[5], d_embed, d_model)
    wo, bo = lin(ks[6], ks[7], d_model, d_embed)
    return dict(wq=wq, bq=bq, wk=wk, bk=bk, wv=wv, bv=bv, wo=wo, bo=bo, h=h)


def reference_mha(params, query, key, value, mask=None):
    """Pure-JAX reference mirroring the PyTorch forward."""
    B, Sq, _ = query.shape
    Sk = key.shape[1]
    D, h = params["wq"].shape[1], params["h"]
    d_k = D // h

    def proj(x, w, b, S):
        y = x @ w + b
        return jnp.transpose(y.reshape(B, S, h, d_k), (0, 2, 1, 3))

    q = proj(query, params["wq"], params["bq"], Sq)
    k = proj(key, params["wk"], params["bk"], Sk)
    v = proj(value, params["wv"], params["bv"], Sk)
    s = jnp.einsum("bhqd,bhkd->bhqk", q, k) / math.sqrt(d_k)
    if mask is not None:
        s = jnp.where(jnp.broadcast_to(mask, s.shape) == 0, -1e9, s)
    p = jax.nn.softmax(s, axis=-1)
    o = jnp.einsum("bhqk,bhkd->bhqd", p, v)
    o = jnp.transpose(o, (0, 2, 1, 3)).reshape(B, Sq, D)
    return o @ params["wo"] + params["bo"]


if __name__ == "__main__":
    B, S, d_embed, d_model, h = 2, 8, 32, 32, 4

    key0 = jax.random.PRNGKey(0)
    kp, kq, kk, kv, k5, k6 = jax.random.split(key0, 6)

    params = init_params(kp, d_embed, d_model, h)
    query = jax.random.normal(kq, (B, S, d_embed), jnp.float32)
    key_x = jax.random.normal(kk, (B, S, d_embed), jnp.float32)
    value = jax.random.normal(kv, (B, S, d_embed), jnp.float32)

    # 1) padding mask (B, 1, 1, S): last 2 key positions of batch 1 masked out.
    pad_mask = jnp.ones((B, 1, 1, S), jnp.int32).at[1, :, :, -2:].set(0)
    out = jax.block_until_ready(
        multi_head_attention(params, query, key_x, value, mask=pad_mask))
    ref_pad = reference_mha(params, query, key_x, value, mask=pad_mask)
    assert out.shape == (B, S, d_embed)
    assert jnp.allclose(out, ref_pad, atol=1e-4, rtol=1e-4), "padding-mask mismatch"

    # 2) no mask -> mask-free pallas_call path.
    out = jax.block_until_ready(
        multi_head_attention(params, query, key_x, value, mask=None))
    ref = reference_mha(params, query, key_x, value, mask=None)
    assert jnp.allclose(out, ref, atol=1e-4, rtol=1e-4), "no-mask mismatch"

    # 3) causal (S, S) mask -> 'full' mask path.
    causal = jnp.tril(jnp.ones((S, S), jnp.int32))
    out = jax.block_until_ready(
        multi_head_attention(params, query, key_x, value, mask=causal))
    ref = reference_mha(params, query, key_x, value, mask=causal)
    assert jnp.allclose(out, ref, atol=1e-4, rtol=1e-4), "causal-mask mismatch"

    # 4) bf16 MXU fast path, f32 accumulation, loose tolerance.
    out_bf16 = jax.block_until_ready(
        multi_head_attention(params, query, key_x, value, mask=pad_mask,
                             compute_dtype=jnp.bfloat16))
    assert jnp.allclose(out_bf16, ref_pad, atol=1e-1, rtol=1e-1), "bf16 mismatch"

    # 5) self-attention (query is key is value) -> fused QKV projection path.
    out = jax.block_until_ready(
        multi_head_attention(params, query, query, query, mask=None))
    ref = reference_mha(params, query, query, query, mask=None)
    assert jnp.allclose(out, ref, atol=1e-4, rtol=1e-4), "self-attn mismatch"

    # 6) un-fused output projection path (forced).
    out = jax.block_until_ready(
        multi_head_attention(params, query, key_x, value, mask=pad_mask,
                             fuse_out_proj=False))
    assert jnp.allclose(out, ref_pad, atol=1e-4, rtol=1e-4), "unfused-out mismatch"

    # 7) awkward long sequence (520 > 512 tile cap, no 128-multiple divisor):
    #    exercises q/kv padding, multi-step kv grid and fused K/V projection.
    S2 = 520
    q2 = jax.random.normal(k5, (1, S2, d_embed), jnp.float32)
    kv2 = jax.random.normal(k6, (1, S2, d_embed), jnp.float32)
    out = jax.block_until_ready(
        multi_head_attention(params, q2, kv2, kv2, mask=None))
    ref = reference_mha(params, q2, kv2, kv2, mask=None)
    assert out.shape == (1, S2, d_embed)
    assert jnp.allclose(out, ref, atol=5e-4, rtol=5e-4), "long-seq mismatch"

    print("KERNEL_OK")
</pallas_src>

<mosaic_0001>
module attributes {stable_mosaic.version = 11 : i64} {
  func.func @_linear_kernel(%arg0: i32, %arg1: memref<16x32xf32, #tpu.memory_space<vmem>>, %arg2: memref<32x32xf32, #tpu.memory_space<vmem>>, %arg3: memref<1x32xf32, #tpu.memory_space<vmem>>, %arg4: memref<16x32xf32, #tpu.memory_space<vmem>>) attributes {dimension_semantics = [#tpu.dimension_semantics<parallel>], iteration_bounds = array<i64: 1>, scalar_prefetch = 0 : i64, scratch_operands = 0 : i64, tpu.core_type = #tpu.core_type<tc>, window_params = [{transform_indices = @transform_0, window_bounds = array<i64: 16, 32>}, {pipeline_mode = #tpu.pipeline_mode<synchronous>, transform_indices = @transform_1, window_bounds = array<i64: 32, 32>}, {pipeline_mode = #tpu.pipeline_mode<synchronous>, transform_indices = @transform_2, window_bounds = array<i64: 1, 32>}, {transform_indices = @transform_3, window_bounds = array<i64: 16, 32>}]} {
    %c0 = arith.constant 0 : index
    %c0_0 = arith.constant 0 : index
    %0 = vector.load %arg1[%c0, %c0_0] : memref<16x32xf32, #tpu.memory_space<vmem>>, vector<16x32xf32>
    %c0_1 = arith.constant 0 : index
    %c0_2 = arith.constant 0 : index
    %1 = vector.load %arg2[%c0_1, %c0_2] : memref<32x32xf32, #tpu.memory_space<vmem>>, vector<32x32xf32>
    %cst = arith.constant dense<0.000000e+00> : vector<16x32xf32>
    %2 = tpu.matmul %0, %1, %cst {dimension_numbers = #tpu.dot_dimension_numbers<[1], [0], [0], [1], [0, 0, 1, 1], [], []>} : vector<16x32xf32>, vector<32x32xf32>, vector<16x32xf32> -> vector<16x32xf32>
    %c0_3 = arith.constant 0 : index
    %c0_4 = arith.constant 0 : index
    %3 = vector.load %arg3[%c0_3, %c0_4] : memref<1x32xf32, #tpu.memory_space<vmem>>, vector<1x32xf32>
    %4 = vector.broadcast %3 : vector<1x32xf32> to vector<16x32xf32>
    %5 = arith.addf %2, %4 : vector<16x32xf32>
    %c0_5 = arith.constant 0 : index
    %c0_6 = arith.constant 0 : index
    %6 = vector.load %arg4[%c0_5, %c0_6] : memref<16x32xf32, #tpu.memory_space<vmem>>, vector<16x32xf32>
    tpu.vector_store %arg4[%c0_5, %c0_6], %5 {strides = array<i32>} : memref<16x32xf32, #tpu.memory_space<vmem>>, vector<16x32xf32>,
    return
  }
  func.func @transform_0(%arg0: i32) -> (i32, i32) {
    %c0_i32 = arith.constant 0 : i32
    %c0_i32_0 = arith.constant 0 : i32
    return %arg0, %c0_i32 : i32, i32
  }
  func.func @transform_1(%arg0: i32) -> (i32, i32) {
    %c0_i32 = arith.constant 0 : i32
    %c0_i32_0 = arith.constant 0 : i32
    %c0_i32_1 = arith.constant 0 : i32
    return %c0_i32, %c0_i32_0 : i32, i32
  }
  func.func @transform_2(%arg0: i32) -> (i32, i32) {
    %c0_i32 = arith.constant 0 : i32
    %c0_i32_0 = arith.constant 0 : i32
    %c0_i32_1 = arith.constant 0 : i32
    return %c0_i32, %c0_i32_0 : i32, i32
  }
  func.func @transform_3(%arg0: i32) -> (i32, i32) {
    %c0_i32 = arith.constant 0 : i32
    %c0_i32_0 = arith.constant 0 : i32
    return %arg0, %c0_i32 : i32, i32
  }
}

</mosaic_0001>

<llo_original>
// kernel: tpu_custom_call.1
$region0: #{tpu_custom_call.1}
  #allocation0 [shape = 'u32[]', space=smem, size = 0x4, offset = 0x4, fixed_abs, tag = 'smem constant byte address 0x4 - core index']
  #allocation1 [shape = 'u32[144,128]{1,0:T(1,128)}', space=vmem, size = 0x12000, scoped, tag = 'internal scratch']
  %s0 = inlined_call_operand.hbm [shape: f32[16,32], index: 0, kind: input, shape index: {}]
  %s1 = inlined_call_operand.hbm [shape: f32[32,32], index: 1, kind: input, shape index: {}]
  %s2 = inlined_call_operand.vmem [shape: f32[1,32], index: 2, kind: input, shape index: {}]
  %s3 = inlined_call_operand.hbm [shape: f32[16,32], index: 3, kind: output, shape index: {}]
  %s4 = sld [smem:[#allocation0]]
  $region30: #{tpu_custom_call.1} parent=0
    _
  %s6 = ssub.s32 1, %s4
  %s7 = scalar_select 0, %s6, %s4
  $region1: #{tpu_custom_call.1} parent=0
    #allocation2 [shape = 'u8[8192]{0}', space=vmem, size = 0x2000, scoped, tag = 'input window, operand 0, single buffered']
    #allocation3 [shape = 's32[1]{0}', space=sflag, size = 0x4, scoped, tag = 'scoped memory for tpu_custom_call.1']
    #allocation4 [shape = 's32[1]{0}', space=sflag, size = 0x4, scoped, tag = 'scoped memory for tpu_custom_call.1']
    #allocation5 [shape = 'u8[16384]{0}', space=vmem, size = 0x4000, scoped, tag = 'input window, operand 1, single buffered']
    #allocation6 [shape = 's32[1]{0}', space=sflag, size = 0x4, scoped, tag = 'scoped memory for tpu_custom_call.1']
    #allocation7 [shape = 'u8[8192]{0}', space=vmem, size = 0x2000, scoped, tag = 'output window, operand 0, single buffered']
    %8 = vsyncpa [#allocation3], 0
    %9 = vsyncpa [#allocation6], 0
    %10 = vsyncpa [#allocation4], 0
    // Predicated region
    $region2: #{tpu_custom_call.1} parent=1 // pred_check
      _
    $region3: #{tpu_custom_call.1} parent=1 // pred_check_branch
      %12 = sbr.rel (0) target = $region5
    $region4: #{tpu_custom_call.1} parent=1 // pred_region
      %s14 = ssub.s32 256, 256
      %15 = vsyncadd [#allocation3], %s14
      %s16 = sshll.u32 [#allocation2], 4
      %s17 = int_to_ptr.vmem [resolvable:$true] %s16
      %22 = dma.hbm_to_vmem [thread:$0]  %s0, 256, %s17, [#allocation3], 128, 128, 8
    $region5: #{tpu_custom_call.1} parent=1 // pred_fallthru
      _
    // Predicated region
    $region6: #{tpu_custom_call.1} parent=1 // pred_check
      _
    $region7: #{tpu_custom_call.1} parent=1 // pred_check_branch
      %24 = sbr.rel (0) target = $region9
    $region8: #{tpu_custom_call.1} parent=1 // pred_region
      %s26 = ssub.s32 512, 512
      %27 = vsyncadd [#allocation6], %s26
      %s28 = sshll.u32 [#allocation5], 4
      %s29 = int_to_ptr.vmem [resolvable:$true] %s28
      %34 = dma.hbm_to_vmem [thread:$0]  %s1, 512, %s29, [#allocation6], 128, 128, 8
    $region9: #{tpu_custom_call.1} parent=1 // pred_fallthru
      _
    // Predicated region
    $region10: #{tpu_custom_call.1} parent=1 // pred_check
      _
    $region11: #{tpu_custom_call.1} parent=1 // pred_check_branch
      %36 = sbr.rel (0) target = $region13
    $region12: #{tpu_custom_call.1} parent=1 // pred_region
      _
    $region13: #{tpu_custom_call.1} parent=1 // pred_fallthru
      _
    // Predicated region
    $region14: #{tpu_custom_call.1} parent=1 // pred_check
      _
    $region15: #{tpu_custom_call.1} parent=1 // pred_check_branch
      %38 = sbr.rel (0) target = $region17
    $region16: #{tpu_custom_call.1} parent=1 // pred_region
      %39 = dma.done [#allocation3], 256
    $region17: #{tpu_custom_call.1} parent=1 // pred_fallthru
      _
    // Predicated region
    $region18: #{tpu_custom_call.1} parent=1 // pred_check
      _
    $region19: #{tpu_custom_call.1} parent=1 // pred_check_branch
      %41 = sbr.rel (0) target = $region21
    $region20: #{tpu_custom_call.1} parent=1 // pred_region
      %42 = dma.done [#allocation6], 512
    $region21: #{tpu_custom_call.1} parent=1 // pred_fallthru
      _
    %v43 = vld [vmem:[#allocation2] sm:$0xff]
    %v44 = vld [vmem:[#allocation2 + $0x8] sm:$0xff]
    %v45 = vld [vmem:[#allocation5] sm:$0xff]
    %v46 = vld [vmem:[#allocation5 + $0x8] sm:$0xff]
    %v47 = vld [vmem:[#allocation5 + $0x10] sm:$0xff]
    %v48 = vld [vmem:[#allocation5 + $0x18] sm:$0xff]
    %v49 = vld [vmem:[%s2] sm:$0x1]
    %v51 = vlaneseq
    %v52 = vshrl.u32 %v51, 7
    %v53 = vsub.s32 0, %v52
    %v54 = vrot.slane %v49, %v53
    %vm56 = vcmask 261120
    %v58 = vsel %vm56, %v43, 0
    %v61 = vsel %vm56, %v44, 0
    %63 = vmatprep.subr.mxu0 0.0
    %64 = vmatpush1.msra.mxu0 %v45
    %65 = vmatprep.subr.mxu0 0.0
    %66 = vmatpush1.msra.mxu0 %v46
    %67 = vmatprep.subr.mxu0 0.0
    %68 = vmatpush1.msra.mxu0 %v47
    %69 = vmatprep.subr.mxu0 0.0
    %70 = vmatpush1.msra.mxu0 %v48
    %71 = vmatprep.subr.mxu0 0.0
    %72 = vmatpush1.msra.mxu0 0.0
    %73 = vmatprep.subr.mxu0 0.0
    %74 = vmatpush1.msra.mxu0 0.0
    %75 = vmatprep.subr.mxu0 0.0
    %76 = vmatpush1.msra.mxu0 0.0
    %77 = vmatprep.subr.mxu0 0.0
    %78 = vmatpush1.msra.mxu0 0.0
    %79 = vmatprep.subr.mxu0 0.0
    %80 = vmatpush1.msra.mxu0 0.0
    %81 = vmatprep.subr.mxu0 0.0
    %82 = vmatpush1.msra.mxu0 0.0
    %83 = vmatprep.subr.mxu0 0.0
    %84 = vmatpush1.msra.mxu0 0.0
    %85 = vmatprep.subr.mxu0 0.0
    %86 = vmatpush1.msra.mxu0 0.0
    %87 = vmatprep.subr.mxu0 0.0
    %88 = vmatpush1.msra.mxu0 0.0
    %89 = vmatprep.subr.mxu0 0.0
    %90 = vmatpush1.msra.mxu0 0.0
    %91 = vmatprep.subr.mxu0 0.0
    %92 = vmatpush1.msra.mxu0 0.0
    %93 = vmatprep.subr.mxu0 0.0
    %94 = vmatpush1.msra.mxu0 0.0
    %95 = vmatprep.subr.mxu0 0.0
    %96 = vmatpush1.msra.mxu0 0.0
    %97 = vmatprep.subr.mxu0 0.0
    %98 = vmatpush1.msra.mxu0 0.0
    %99 = vmatprep.subr.mxu0 0.0
    %100 = vmatpush1.msra.mxu0 0.0
    %101 = vmatprep.subr.mxu0 0.0
    %102 = vmatpush1.msra.mxu0 0.0
    %103 = vmatprep.subr.mxu0 0.0
    %104 = vmatpush1.msra.mxu0 0.0
    %105 = vmatprep.subr.mxu0 0.0
    %106 = vmatpush1.msra.mxu0 0.0
    %107 = vmatprep.subr.mxu0 0.0
    %108 = vmatpush1.msra.mxu0 0.0
    %109 = vmatprep.subr.mxu0 0.0
    %110 = vmatpush1.msra.mxu0 0.0
    %111 = vmatprep.subr.mxu0 0.0
    %112 = vmatpush1.msra.mxu0 0.0
    %113 = vmatprep.subr.mxu0 0.0
    %114 = vmatpush1.msra.mxu0 0.0
    %115 = vmatprep.subr.mxu0 0.0
    %116 = vmatpush1.msra.mxu0 0.0
    %117 = vmatprep.subr.mxu0 0.0
    %118 = vmatpush1.msra.mxu0 0.0
    %119 = vmatprep.subr.mxu0 0.0
    %120 = vmatpush1.msra.mxu0 0.0
    %121 = vmatprep.subr.mxu0 0.0
    %122 = vmatpush1.msra.mxu0 0.0
    %123 = vmatprep.subr.mxu0 0.0
    %124 = vmatpush1.msra.mxu0 0.0
    %125 = vmatprep.subr.mxu0 0.0
    %126 = vmatpush1.msra.mxu0 0.0
    %127 = vmatprep.mubr.f32.mxu0 0.0
    %128 = vmatmul.mubr.f32.gmra.mrb[0].mxu0 %v58
    %v129 = vpop.f32.mrb[0].mxu0
    %v130 = vadd.f32 %v54, %v129
    %v131 = vpop.f32.mrb[0].mxu0
    %132 = vmatprep.mubr.f32.mxu0 0.0
    %133 = vmatmul.mubr.f32.gmra.mrb[0].mxu0 %v61
    %v134 = vpop.f32.mrb[0].mxu0
    %v135 = vadd.f32 %v54, %v134
    %v136 = vpop.f32.mrb[0].mxu0
    %137 = vdwg.mxu0
    %138 = vst.msk [vmem:[#allocation7] sm:$0xff] %vm56, %v130
    %139 = vst.msk [vmem:[#allocation7 + $0x8] sm:$0xff] %vm56, %v135
    // Predicated region
    $region22: #{tpu_custom_call.1} parent=1 // pred_check
      _
    $region23: #{tpu_custom_call.1} parent=1 // pred_check_branch
      %141 = sbr.rel (0) target = $region25
    $region24: #{tpu_custom_call.1} parent=1 // pred_region
      %s143 = ssub.s32 256, 256
      %144 = vsyncadd [#allocation4], %s143
      %s145 = sshll.u32 [#allocation7], 4
      %s146 = int_to_ptr.vmem [resolvable:$true] %s145
      %151 = dma.vmem_to_hbm [thread:$0]  %s146, 256, %s3, [#allocation4], 128, 128, 8
    $region25: #{tpu_custom_call.1} parent=1 // pred_fallthru
      _
    // Predicated region
    $region26: #{tpu_custom_call.1} parent=1 // pred_check
      _
    $region27: #{tpu_custom_call.1} parent=1 // pred_check_branch
      %153 = sbr.rel (0) target = $region29
    $region28: #{tpu_custom_call.1} parent=1 // pred_region
      %154 = dma.done [#allocation4], 256
    $region29: #{tpu_custom_call.1} parent=1 // pred_fallthru
      _
    %155 = vsyncpa [#allocation3], 1
    %156 = vsyncpa [#allocation6], 1
    %157 = vsyncpa [#allocation4], 1

</llo_original>
